<compile_context>
chip_gen: v6e
topology: v6e:2x2x1
jax: 0.10.0
libtpu: 0.0.40
codegen_flags: <defaults>
</compile_context>

<pallas_src>
import functools

import jax
import jax.numpy as jnp
from jax.experimental import pallas as pl
from jax.experimental.pallas import tpu as pltpu


def _block_kernel(x_ref, w_ref, m_ref, b_ref, cs_ref, csh_ref, a_ref,
                  o_ref, patches_ref, *, H, W, Cin, Cout, eps):
    """Fused conv3x3 + GroupNorm + FiLM + SiLU for one batch element.

    x_ref       : (1, Cin, H*W)   input (NCHW flattened), f32
    w_ref       : (Cout, 9*Cin)   conv weight, bf16, column order = (tap, cin)
    m_ref       : (9, H*W)        0/1 border masks per tap, f32
    b_ref       : (Cout, 1)       conv bias, f32
    cs_ref      : (1, Cout, 1)    combined scale  = gamma * (film_scale + 1)
    csh_ref     : (1, Cout, 1)    combined shift  = beta * (film_scale + 1) + film_shift
    a_ref       : (Cout, Cout)    group-averaging matrix (1/Cg within a group)
    o_ref       : (1, Cout, H*W)  output (NCHW flattened), lane-dense
    patches_ref : (9*Cin, H*W)    bf16 VMEM scratch: transposed im2col buffer
    """
    HW = H * W

    # ---- Build transposed im2col buffer in VMEM scratch --------------------
    x32 = x_ref[0]                       # (Cin, HW) f32
    masks = m_ref[...]                   # (9, HW) f32, hoisted out of the tap loop
    tap = 0
    for sy in (-1, 0, 1):
        for sx in (-1, 0, 1):
            d = sy * W + sx              # flat shift for this tap
            shifted = x32 if d == 0 else pltpu.roll(x32, shift=(-d) % HW, axis=1)
            patches_ref[pl.ds(tap * Cin, Cin), :] = (
                shifted * masks[tap:tap + 1, :]).astype(jnp.bfloat16)
            tap += 1

    # ---- Conv3x3 as a single fat MXU matmul (K = 9*Cin), f32 accumulate ----
    acc = jnp.dot(w_ref[...], patches_ref[...],
                  preferred_element_type=jnp.float32)           # (Cout, HW) f32
    acc = acc + b_ref[...]                                      # conv bias

    # ---- GroupNorm(8): group stats via one (Cout,Cout)@(Cout,2) matmul -----
    inv_hw = 1.0 / HW
    m1 = jnp.sum(acc, axis=1, keepdims=True) * inv_hw           # E[x]   per channel
    m2 = jnp.sum(acc * acc, axis=1, keepdims=True) * inv_hw     # E[x^2] per channel
    stats = jnp.concatenate([m1, m2], axis=1)                   # (Cout, 2)
    gstats = jnp.dot(a_ref[...], stats,
                     preferred_element_type=jnp.float32)        # group-averaged
    mean_g = gstats[:, 0:1]                                     # (Cout, 1)
    var_g = gstats[:, 1:2] - mean_g * mean_g                    # biased, like torch
    inv_std = jax.lax.rsqrt(var_g + eps)                        # (Cout, 1)

    # ---- Normalize + GroupNorm affine + FiLM folded into one FMA -----------
    a_coef = inv_std * cs_ref[0]                                # (Cout, 1)
    b_coef = csh_ref[0] - mean_g * a_coef                       # (Cout, 1)
    y = acc * a_coef + b_coef                                   # (Cout, HW)

    # ---- SiLU (sigmoid on EUP, multiply on VPU) -----------------------------
    y = y * jax.nn.sigmoid(y)

    o_ref[0] = y.astype(o_ref.dtype)                            # lane-dense store


def block_forward(x_nchw, params, scale=None, shift=None, *, groups=8, eps=1e-5):
    """Matches Block.forward(x, scale, shift) from ddpm/model.py (NCHW in/out)."""
    w, b, gamma, beta = params["w"], params["b"], params["gamma"], params["beta"]
    B, Cin, H, W = x_nchw.shape
    Cout = w.shape[0]
    assert Cout % groups == 0
    Cg = Cout // groups
    HW = H * W

    # Free reshape: stay in NCHW memory order, flatten spatial dims onto lanes.
    x_flat = x_nchw.reshape(B, Cin, HW)

    # Weight OIHW -> (Cout, 9*Cin), column index = (tap=kh*3+kw)*Cin + cin. bf16 for MXU.
    w_t = jnp.transpose(w, (0, 2, 3, 1)).reshape(Cout, 9 * Cin).astype(jnp.bfloat16)

    # Border masks (implicit zero padding) per tap over the flattened H*W lane axis.
    yy, xx = jnp.meshgrid(jnp.arange(H), jnp.arange(W), indexing="ij")
    yy = yy.reshape(-1)
    xx = xx.reshape(-1)
    mlist = []
    for sy in (-1, 0, 1):
        for sx in (-1, 0, 1):
            ok = (yy + sy >= 0) & (yy + sy < H) & (xx + sx >= 0) & (xx + sx < W)
            mlist.append(ok)
    masks = jnp.stack(mlist, axis=0).astype(jnp.float32)         # (9, HW)

    # Original module applies FiLM only if BOTH scale and shift are given.
    gamma_f = gamma.astype(jnp.float32)
    beta_f = beta.astype(jnp.float32)
    if scale is None or shift is None:
        comb_scale = jnp.broadcast_to(gamma_f[None, :], (B, Cout))
        comb_shift = jnp.broadcast_to(beta_f[None, :], (B, Cout))
    else:
        s1 = scale.astype(jnp.float32) + 1.0                     # (B, Cout)
        comb_scale = gamma_f[None, :] * s1
        comb_shift = beta_f[None, :] * s1 + shift.astype(jnp.float32)
    comb_scale = comb_scale.reshape(B, Cout, 1)
    comb_shift = comb_shift.reshape(B, Cout, 1)

    # Group-averaging matrix: A[i, j] = 1/Cg if channels i, j share a group.
    gid = jnp.arange(Cout) // Cg
    A = (gid[:, None] == gid[None, :]).astype(jnp.float32) / Cg

    b_c = b.reshape(Cout, 1).astype(jnp.float32)

    kernel = functools.partial(_block_kernel, H=H, W=W, Cin=Cin, Cout=Cout, eps=eps)

    out_flat = pl.pallas_call(
        kernel,
        out_shape=jax.ShapeDtypeStruct((B, Cout, HW), jnp.float32),
        grid_spec=pltpu.PrefetchScalarGridSpec(
            num_scalar_prefetch=0,
            grid=(B,),
            in_specs=[
                pl.BlockSpec((1, Cin, HW), lambda i: (i, 0, 0)),      # x
                pl.BlockSpec((Cout, 9 * Cin), lambda i: (0, 0)),      # weight
                pl.BlockSpec((9, HW), lambda i: (0, 0)),              # border masks
                pl.BlockSpec((Cout, 1), lambda i: (0, 0)),            # conv bias
                pl.BlockSpec((1, Cout, 1), lambda i: (i, 0, 0)),      # combined scale
                pl.BlockSpec((1, Cout, 1), lambda i: (i, 0, 0)),      # combined shift
                pl.BlockSpec((Cout, Cout), lambda i: (0, 0)),         # group-avg matrix
            ],
            out_specs=pl.BlockSpec((1, Cout, HW), lambda i: (i, 0, 0)),
            scratch_shapes=[pltpu.VMEM((9 * Cin, HW), jnp.bfloat16)],  # im2col buffer
        ),
        compiler_params=pltpu.CompilerParams(
            dimension_semantics=("parallel",),
            vmem_limit_bytes=32 * 1024 * 1024,
        ),
    )(x_flat, w_t, masks, b_c, comb_scale, comb_shift, A)

    return out_flat.reshape(B, Cout, H, W)   # free reshape back to NCHW


def block_reference(x_nchw, params, scale=None, shift=None, *, groups=8, eps=1e-5,
                    matmul_dtype=jnp.float32):
    """Pure-JAX reference mirroring the PyTorch module, for validation.

    `matmul_dtype=bfloat16` mimics the kernel's bf16-input / f32-accumulate conv.
    """
    w, b, gamma, beta = params["w"], params["b"], params["gamma"], params["beta"]
    y = jax.lax.conv_general_dilated(
        x_nchw.astype(matmul_dtype), w.astype(matmul_dtype),
        window_strides=(1, 1), padding=((1, 1), (1, 1)),
        dimension_numbers=("NCHW", "OIHW", "NCHW"),
        preferred_element_type=jnp.float32)
    y = y + b[None, :, None, None]
    B, C, H, W = y.shape
    yg = y.reshape(B, groups, -1)
    mean = yg.mean(axis=-1, keepdims=True)
    var = yg.var(axis=-1, keepdims=True)            # biased, like torch GroupNorm
    yn = ((yg - mean) / jnp.sqrt(var + eps)).reshape(B, C, H, W)
    yn = yn * gamma[None, :, None, None] + beta[None, :, None, None]
    if scale is not None and shift is not None:
        yn = yn * (scale[:, :, None, None] + 1.0) + shift[:, :, None, None]
    return yn * jax.nn.sigmoid(yn)


if __name__ == "__main__":
    B, Cin, Cout, H, W = 2, 8, 16, 16, 16

    key = jax.random.PRNGKey(0)
    k_x, k_w, k_b, k_g, k_be, k_sc, k_sh = jax.random.split(key, 7)

    params = {
        "w": jax.random.normal(k_w, (Cout, Cin, 3, 3), jnp.float32) * 0.1,   # OIHW
        "b": jax.random.normal(k_b, (Cout,), jnp.float32) * 0.1,
        "gamma": 1.0 + 0.1 * jax.random.normal(k_g, (Cout,), jnp.float32),
        "beta": 0.1 * jax.random.normal(k_be, (Cout,), jnp.float32),
    }

    x = jax.random.normal(k_x, (B, Cin, H, W), jnp.float32)
    scale = 0.1 * jax.random.normal(k_sc, (B, Cout), jnp.float32)
    shift = 0.1 * jax.random.normal(k_sh, (B, Cout), jnp.float32)

    out = jax.block_until_ready(block_forward(x, params, scale, shift))
    assert out.shape == (B, Cout, H, W), out.shape

    # Tight check vs a reference with matching matmul precision (bf16 in, f32 acc).
    ref_bf16 = block_reference(x, params, scale, shift, matmul_dtype=jnp.bfloat16)
    err_bf = float(jnp.abs(out - ref_bf16).max())
    assert jnp.allclose(out, ref_bf16, atol=5e-3, rtol=5e-3), err_bf

    # Looser check vs the full-f32 reference (tolerance consistent with bf16 MXU inputs).
    ref_f32 = block_reference(x, params, scale, shift)
    err_32 = float(jnp.abs(out - ref_f32).max())
    assert jnp.allclose(out, ref_f32, atol=3e-2, rtol=3e-2), err_32

    # No-FiLM path (scale/shift = None) must also match.
    out_nf = jax.block_until_ready(block_forward(x, params))
    ref_nf = block_reference(x, params, matmul_dtype=jnp.bfloat16)
    err_nf = float(jnp.abs(out_nf - ref_nf).max())
    assert jnp.allclose(out_nf, ref_nf, atol=5e-3, rtol=5e-3), err_nf

    print("KERNEL_OK")
</pallas_src>

<mosaic_0001>
module attributes {stable_mosaic.version = 11 : i64} {
  func.func @_block_kernel(%arg0: i32, %arg1: memref<1x8x256xf32, #tpu.memory_space<vmem>>, %arg2: memref<16x72xbf16, #tpu.memory_space<vmem>>, %arg3: memref<9x256xf32, #tpu.memory_space<vmem>>, %arg4: memref<16x1xf32, #tpu.memory_space<vmem>>, %arg5: memref<1x16x1xf32, #tpu.memory_space<vmem>>, %arg6: memref<1x16x1xf32, #tpu.memory_space<vmem>>, %arg7: memref<16x16xf32, #tpu.memory_space<vmem>>, %arg8: memref<1x16x256xf32, #tpu.memory_space<vmem>>, %arg9: memref<72x256xbf16, #tpu.memory_space<vmem>>) attributes {dimension_semantics = [#tpu.dimension_semantics<parallel>], iteration_bounds = array<i64: 2>, scalar_prefetch = 0 : i64, scratch_operands = 1 : i64, tpu.core_type = #tpu.core_type<tc>, window_params = [{transform_indices = @transform_0, window_bounds = array<i64: 1, 8, 256>}, {pipeline_mode = #tpu.pipeline_mode<synchronous>, transform_indices = @transform_1, window_bounds = array<i64: 16, 72>}, {pipeline_mode = #tpu.pipeline_mode<synchronous>, transform_indices = @transform_2, window_bounds = array<i64: 9, 256>}, {pipeline_mode = #tpu.pipeline_mode<synchronous>, transform_indices = @transform_3, window_bounds = array<i64: 16, 1>}, {transform_indices = @transform_4, window_bounds = array<i64: 1, 16, 1>}, {transform_indices = @transform_5, window_bounds = array<i64: 1, 16, 1>}, {pipeline_mode = #tpu.pipeline_mode<synchronous>, transform_indices = @transform_6, window_bounds = array<i64: 16, 16>}, {transform_indices = @transform_7, window_bounds = array<i64: 1, 16, 256>}]} {
    %c0 = arith.constant 0 : index
    %c0_0 = arith.constant 0 : index
    %c0_1 = arith.constant 0 : index
    %0 = vector.load %arg1[%c0, %c0_0, %c0_1] : memref<1x8x256xf32, #tpu.memory_space<vmem>>, vector<1x8x256xf32>
    %1 = vector.shape_cast %0 : vector<1x8x256xf32> to vector<8x256xf32>
    %c0_2 = arith.constant 0 : index
    %c0_3 = arith.constant 0 : index
    %2 = vector.load %arg3[%c0_2, %c0_3] : memref<9x256xf32, #tpu.memory_space<vmem>>, vector<9x256xf32>
    %c17_i32 = arith.constant 17 : i32
    %3 = tpu.dynamic_rotate %1 by %c17_i32 dim 1 : vector<8x256xf32>, i32 -> vector<8x256xf32>
    %4 = vector.extract_strided_slice %2 {offsets = [0, 0], sizes = [1, 256], strides = [1, 1]} : vector<9x256xf32> to vector<1x256xf32>
    %5 = vector.broadcast %4 : vector<1x256xf32> to vector<8x256xf32>
    %6 = arith.mulf %3, %5 : vector<8x256xf32>
    %7 = arith.truncf %6 : vector<8x256xf32> to vector<8x256xbf16>
    %c0_4 = arith.constant 0 : index
    %c0_5 = arith.constant 0 : index
    %8 = vector.load %arg9[%c0_4, %c0_5] : memref<72x256xbf16, #tpu.memory_space<vmem>>, vector<8x256xbf16>
    tpu.vector_store %arg9[%c0_4, %c0_5], %7 {strides = array<i32>} : memref<72x256xbf16, #tpu.memory_space<vmem>>, vector<8x256xbf16>,
    %c16_i32 = arith.constant 16 : i32
    %9 = tpu.dynamic_rotate %1 by %c16_i32 dim 1 : vector<8x256xf32>, i32 -> vector<8x256xf32>
    %10 = vector.extract_strided_slice %2 {offsets = [1, 0], sizes = [1, 256], strides = [1, 1]} : vector<9x256xf32> to vector<1x256xf32>
    %11 = vector.broadcast %10 : vector<1x256xf32> to vector<8x256xf32>
    %12 = arith.mulf %9, %11 : vector<8x256xf32>
    %13 = arith.truncf %12 : vector<8x256xf32> to vector<8x256xbf16>
    %c8 = arith.constant 8 : index
    %c0_6 = arith.constant 0 : index
    %14 = vector.load %arg9[%c8, %c0_6] : memref<72x256xbf16, #tpu.memory_space<vmem>>, vector<8x256xbf16>
    tpu.vector_store %arg9[%c8, %c0_6], %13 {strides = array<i32>} : memref<72x256xbf16, #tpu.memory_space<vmem>>, vector<8x256xbf16>,
    %c15_i32 = arith.constant 15 : i32
    %15 = tpu.dynamic_rotate %1 by %c15_i32 dim 1 : vector<8x256xf32>, i32 -> vector<8x256xf32>
    %16 = vector.extract_strided_slice %2 {offsets = [2, 0], sizes = [1, 256], strides = [1, 1]} : vector<9x256xf32> to vector<1x256xf32>
    %17 = vector.broadcast %16 : vector<1x256xf32> to vector<8x256xf32>
    %18 = arith.mulf %15, %17 : vector<8x256xf32>
    %19 = arith.truncf %18 : vector<8x256xf32> to vector<8x256xbf16>
    %c16 = arith.constant 16 : index
    %c0_7 = arith.constant 0 : index
    %20 = vector.load %arg9[%c16, %c0_7] : memref<72x256xbf16, #tpu.memory_space<vmem>>, vector<8x256xbf16>
    tpu.vector_store %arg9[%c16, %c0_7], %19 {strides = array<i32>} : memref<72x256xbf16, #tpu.memory_space<vmem>>, vector<8x256xbf16>,
    %c1_i32 = arith.constant 1 : i32
    %21 = tpu.dynamic_rotate %1 by %c1_i32 dim 1 : vector<8x256xf32>, i32 -> vector<8x256xf32>
    %22 = vector.extract_strided_slice %2 {offsets = [3, 0], sizes = [1, 256], strides = [1, 1]} : vector<9x256xf32> to vector<1x256xf32>
    %23 = vector.broadcast %22 : vector<1x256xf32> to vector<8x256xf32>
    %24 = arith.mulf %21, %23 : vector<8x256xf32>
    %25 = arith.truncf %24 : vector<8x256xf32> to vector<8x256xbf16>
    %c24 = arith.constant 24 : index
    %c0_8 = arith.constant 0 : index
    %26 = vector.load %arg9[%c24, %c0_8] : memref<72x256xbf16, #tpu.memory_space<vmem>>, vector<8x256xbf16>
    tpu.vector_store %arg9[%c24, %c0_8], %25 {strides = array<i32>} : memref<72x256xbf16, #tpu.memory_space<vmem>>, vector<8x256xbf16>,
    %27 = vector.extract_strided_slice %2 {offsets = [4, 0], sizes = [1, 256], strides = [1, 1]} : vector<9x256xf32> to vector<1x256xf32>
    %28 = vector.broadcast %27 : vector<1x256xf32> to vector<8x256xf32>
    %29 = arith.mulf %1, %28 : vector<8x256xf32>
    %30 = arith.truncf %29 : vector<8x256xf32> to vector<8x256xbf16>
    %c32 = arith.constant 32 : index
    %c0_9 = arith.constant 0 : index
    %31 = vector.load %arg9[%c32, %c0_9] : memref<72x256xbf16, #tpu.memory_space<vmem>>, vector<8x256xbf16>
    tpu.vector_store %arg9[%c32, %c0_9], %30 {strides = array<i32>} : memref<72x256xbf16, #tpu.memory_space<vmem>>, vector<8x256xbf16>,
    %c255_i32 = arith.constant 255 : i32
    %32 = tpu.dynamic_rotate %1 by %c255_i32 dim 1 : vector<8x256xf32>, i32 -> vector<8x256xf32>
    %33 = vector.extract_strided_slice %2 {offsets = [5, 0], sizes = [1, 256], strides = [1, 1]} : vector<9x256xf32> to vector<1x256xf32>
    %34 = vector.broadcast %33 : vector<1x256xf32> to vector<8x256xf32>
    %35 = arith.mulf %32, %34 : vector<8x256xf32>
    %36 = arith.truncf %35 : vector<8x256xf32> to vector<8x256xbf16>
    %c40 = arith.constant 40 : index
    %c0_10 = arith.constant 0 : index
    %37 = vector.load %arg9[%c40, %c0_10] : memref<72x256xbf16, #tpu.memory_space<vmem>>, vector<8x256xbf16>
    tpu.vector_store %arg9[%c40, %c0_10], %36 {strides = array<i32>} : memref<72x256xbf16, #tpu.memory_space<vmem>>, vector<8x256xbf16>,
    %c241_i32 = arith.constant 241 : i32
    %38 = tpu.dynamic_rotate %1 by %c241_i32 dim 1 : vector<8x256xf32>, i32 -> vector<8x256xf32>
    %39 = vector.extract_strided_slice %2 {offsets = [6, 0], sizes = [1, 256], strides = [1, 1]} : vector<9x256xf32> to vector<1x256xf32>
    %40 = vector.broadcast %39 : vector<1x256xf32> to vector<8x256xf32>
    %41 = arith.mulf %38, %40 : vector<8x256xf32>
    %42 = arith.truncf %41 : vector<8x256xf32> to vector<8x256xbf16>
    %c48 = arith.constant 48 : index
    %c0_11 = arith.constant 0 : index
    %43 = vector.load %arg9[%c48, %c0_11] : memref<72x256xbf16, #tpu.memory_space<vmem>>, vector<8x256xbf16>
    tpu.vector_store %arg9[%c48, %c0_11], %42 {strides = array<i32>} : memref<72x256xbf16, #tpu.memory_space<vmem>>, vector<8x256xbf16>,
    %c240_i32 = arith.constant 240 : i32
    %44 = tpu.dynamic_rotate %1 by %c240_i32 dim 1 : vector<8x256xf32>, i32 -> vector<8x256xf32>
    %45 = vector.extract_strided_slice %2 {offsets = [7, 0], sizes = [1, 256], strides = [1, 1]} : vector<9x256xf32> to vector<1x256xf32>
    %46 = vector.broadcast %45 : vector<1x256xf32> to vector<8x256xf32>
    %47 = arith.mulf %44, %46 : vector<8x256xf32>
    %48 = arith.truncf %47 : vector<8x256xf32> to vector<8x256xbf16>
    %c56 = arith.constant 56 : index
    %c0_12 = arith.constant 0 : index
    %49 = vector.load %arg9[%c56, %c0_12] : memref<72x256xbf16, #tpu.memory_space<vmem>>, vector<8x256xbf16>
    tpu.vector_store %arg9[%c56, %c0_12], %48 {strides = array<i32>} : memref<72x256xbf16, #tpu.memory_space<vmem>>, vector<8x256xbf16>,
    %c239_i32 = arith.constant 239 : i32
    %50 = tpu.dynamic_rotate %1 by %c239_i32 dim 1 : vector<8x256xf32>, i32 -> vector<8x256xf32>
    %51 = vector.extract_strided_slice %2 {offsets = [8, 0], sizes = [1, 256], strides = [1, 1]} : vector<9x256xf32> to vector<1x256xf32>
    %52 = vector.broadcast %51 : vector<1x256xf32> to vector<8x256xf32>
    %53 = arith.mulf %50, %52 : vector<8x256xf32>
    %54 = arith.truncf %53 : vector<8x256xf32> to vector<8x256xbf16>
    %c64 = arith.constant 64 : index
    %c0_13 = arith.constant 0 : index
    %55 = vector.load %arg9[%c64, %c0_13] : memref<72x256xbf16, #tpu.memory_space<vmem>>, vector<8x256xbf16>
    tpu.vector_store %arg9[%c64, %c0_13], %54 {strides = array<i32>} : memref<72x256xbf16, #tpu.memory_space<vmem>>, vector<8x256xbf16>,
    %c0_14 = arith.constant 0 : index
    %c0_15 = arith.constant 0 : index
    %56 = vector.load %arg2[%c0_14, %c0_15] : memref<16x72xbf16, #tpu.memory_space<vmem>>, vector<16x72xbf16>
    %c0_16 = arith.constant 0 : index
    %c0_17 = arith.constant 0 : index
    %57 = vector.load %arg9[%c0_16, %c0_17] : memref<72x256xbf16, #tpu.memory_space<vmem>>, vector<72x256xbf16>
    %cst = arith.constant dense<0.000000e+00> : vector<16x256xf32>
    %58 = tpu.matmul %56, %57, %cst {dimension_numbers = #tpu.dot_dimension_numbers<[1], [0], [0], [1], [0, 0, 1, 1], [], []>} : vector<16x72xbf16>, vector<72x256xbf16>, vector<16x256xf32> -> vector<16x256xf32>
    %c0_18 = arith.constant 0 : index
    %c0_19 = arith.constant 0 : index
    %59 = vector.load %arg4[%c0_18, %c0_19] : memref<16x1xf32, #tpu.memory_space<vmem>>, vector<16x1xf32>
    %60 = vector.broadcast %59 : vector<16x1xf32> to vector<16x256xf32>
    %61 = arith.addf %58, %60 : vector<16x256xf32>
    %cst_20 = arith.constant dense<0.000000e+00> : vector<16xf32>
    %62 = vector.multi_reduction <add>, %61, %cst_20 [1] : vector<16x256xf32> to vector<16xf32>
    %63 = vector.shape_cast %62 : vector<16xf32> to vector<16x1xf32>
    %cst_21 = arith.constant 3.906250e-03 : f32
    %64 = vector.broadcast %cst_21 : f32 to vector<16x1xf32>
    %65 = arith.mulf %63, %64 : vector<16x1xf32>
    %66 = arith.mulf %61, %61 : vector<16x256xf32>
    %cst_22 = arith.constant dense<0.000000e+00> : vector<16xf32>
    %67 = vector.multi_reduction <add>, %66, %cst_22 [1] : vector<16x256xf32> to vector<16xf32>
    %68 = vector.shape_cast %67 : vector<16xf32> to vector<16x1xf32>
    %cst_23 = arith.constant 3.906250e-03 : f32
    %69 = vector.broadcast %cst_23 : f32 to vector<16x1xf32>
    %70 = arith.mulf %68, %69 : vector<16x1xf32>
    %71 = tpu.concatenate %65, %70 in 1 : vector<16x1xf32>, vector<16x1xf32> -> vector<16x2xf32>
    %c0_24 = arith.constant 0 : index
    %c0_25 = arith.constant 0 : index
    %72 = vector.load %arg7[%c0_24, %c0_25] : memref<16x16xf32, #tpu.memory_space<vmem>>, vector<16x16xf32>
    %cst_26 = arith.constant dense<0.000000e+00> : vector<16x2xf32>
    %73 = tpu.matmul %72, %71, %cst_26 {dimension_numbers = #tpu.dot_dimension_numbers<[1], [0], [0], [1], [0, 0, 1, 1], [], []>} : vector<16x16xf32>, vector<16x2xf32>, vector<16x2xf32> -> vector<16x2xf32>
    %74 = vector.extract_strided_slice %73 {offsets = [0, 0], sizes = [16, 1], strides = [1, 1]} : vector<16x2xf32> to vector<16x1xf32>
    %75 = vector.extract_strided_slice %73 {offsets = [0, 1], sizes = [16, 1], strides = [1, 1]} : vector<16x2xf32> to vector<16x1xf32>
    %76 = arith.mulf %74, %74 : vector<16x1xf32>
    %77 = arith.subf %75, %76 : vector<16x1xf32>
    %cst_27 = arith.constant 9.99999974E-6 : f32
    %78 = vector.broadcast %cst_27 : f32 to vector<16x1xf32>
    %79 = arith.addf %77, %78 : vector<16x1xf32>
    %80 = math.rsqrt %79 : vector<16x1xf32>
    %c0_28 = arith.constant 0 : index
    %c0_29 = arith.constant 0 : index
    %c0_30 = arith.constant 0 : index
    %81 = vector.load %arg5[%c0_28, %c0_29, %c0_30] : memref<1x16x1xf32, #tpu.memory_space<vmem>>, vector<1x16x1xf32>
    %82 = vector.shape_cast %81 : vector<1x16x1xf32> to vector<16x1xf32>
    %83 = arith.mulf %80, %82 : vector<16x1xf32>
    %c0_31 = arith.constant 0 : index
    %c0_32 = arith.constant 0 : index
    %c0_33 = arith.constant 0 : index
    %84 = vector.load %arg6[%c0_31, %c0_32, %c0_33] : memref<1x16x1xf32, #tpu.memory_space<vmem>>, vector<1x16x1xf32>
    %85 = vector.shape_cast %84 : vector<1x16x1xf32> to vector<16x1xf32>
    %86 = arith.mulf %74, %83 : vector<16x1xf32>
    %87 = arith.subf %85, %86 : vector<16x1xf32>
    %88 = vector.broadcast %83 : vector<16x1xf32> to vector<16x256xf32>
    %89 = arith.mulf %61, %88 : vector<16x256xf32>
    %90 = vector.broadcast %87 : vector<16x1xf32> to vector<16x256xf32>
    %91 = arith.addf %89, %90 : vector<16x256xf32>
    %92 = arith.negf %91 : vector<16x256xf32>
    %93 = math.exp %92 : vector<16x256xf32>
    %cst_34 = arith.constant 1.000000e+00 : f32
    %94 = vector.broadcast %cst_34 : f32 to vector<16x256xf32>
    %95 = arith.addf %94, %93 : vector<16x256xf32>
    %96 = arith.divf %94, %95 : vector<16x256xf32>
    %97 = arith.mulf %91, %96 : vector<16x256xf32>
    %c0_35 = arith.constant 0 : index
    %c0_36 = arith.constant 0 : index
    %c0_37 = arith.constant 0 : index
    %98 = vector.load %arg8[%c0_35, %c0_36, %c0_37] : memref<1x16x256xf32, #tpu.memory_space<vmem>>, vector<1x16x256xf32>
    %99 = vector.shape_cast %98 : vector<1x16x256xf32> to vector<16x256xf32>
    %100 = vector.shape_cast %97 : vector<16x256xf32> to vector<1x16x256xf32>
    tpu.vector_store %arg8[%c0_35, %c0_36, %c0_37], %100 {strides = array<i32>} : memref<1x16x256xf32, #tpu.memory_space<vmem>>, vector<1x16x256xf32>,
    return
  }
  func.func @transform_0(%arg0: i32) -> (i32, i32, i32) {
    %c0_i32 = arith.constant 0 : i32
    %c0_i32_0 = arith.constant 0 : i32
    %c0_i32_1 = arith.constant 0 : i32
    return %arg0, %c0_i32, %c0_i32_0 : i32, i32, i32
  }
  func.func @transform_1(%arg0: i32) -> (i32, i32) {
    %c0_i32 = arith.constant 0 : i32
    %c0_i32_0 = arith.constant 0 : i32
    %c0_i32_1 = arith.constant 0 : i32
    return %c0_i32, %c0_i32_0 : i32, i32
  }
  func.func @transform_2(%arg0: i32) -> (i32, i32) {
    %c0_i32 = arith.constant 0 : i32
    %c0_i32_0 = arith.constant 0 : i32
    %c0_i32_1 = arith.constant 0 : i32
    return %c0_i32, %c0_i32_0 : i32, i32
  }
  func.func @transform_3(%arg0: i32) -> (i32, i32) {
    %c0_i32 = arith.constant 0 : i32
    %c0_i32_0 = arith.constant 0 : i32
    %c0_i32_1 = arith.constant 0 : i32
    return %c0_i32, %c0_i32_0 : i32, i32
  }
  func.func @transform_4(%arg0: i32) -> (i32, i32, i32) {
    %c0_i32 = arith.constant 0 : i32
    %c0_i32_0 = arith.constant 0 : i32
    %c0_i32_1 = arith.constant 0 : i32
    return %arg0, %c0_i32, %c0_i32_0 : i32, i32, i32
  }
  func.func @transform_5(%arg0: i32) -> (i32, i32, i32) {
    %c0_i32 = arith.constant 0 : i32
    %c0_i32_0 = arith.constant 0 : i32
    %c0_i32_1 = arith.constant 0 : i32
    return %arg0, %c0_i32, %c0_i32_0 : i32, i32, i32
  }
  func.func @transform_6(%arg0: i32) -> (i32, i32) {
    %c0_i32 = arith.constant 0 : i32
    %c0_i32_0 = arith.constant 0 : i32
    %c0_i32_1 = arith.constant 0 : i32
    return %c0_i32, %c0_i32_0 : i32, i32
  }
  func.func @transform_7(%arg0: i32) -> (i32, i32, i32) {
    %c0_i32 = arith.constant 0 : i32
    %c0_i32_0 = arith.constant 0 : i32
    %c0_i32_1 = arith.constant 0 : i32
    return %arg0, %c0_i32, %c0_i32_0 : i32, i32, i32
  }
}

</mosaic_0001>

<llo_original>
// kernel: tpu_custom_call.1
$region0: #{tpu_custom_call.1}
  #allocation0 [shape = 'u32[]', space=smem, size = 0x4, offset = 0x4, fixed_abs, tag = 'smem constant byte address 0x4 - core index']
  #allocation1 [shape = 'u32[144,128]{1,0:T(1,128)}', space=vmem, size = 0x12000, scoped, tag = 'internal scratch']
  #allocation2 [shape = 'bf16[72,256]{1,0:T(8,128)(2,1)}', space=vmem, size = 0x9000, scoped, tag = 'scratch operand']
  %s0 = inlined_call_operand.vmem [shape: f32[2,8,256], index: 0, kind: input, shape index: {}]
  %s1 = inlined_call_operand.hbm [shape: bf16[16,72], index: 1, kind: input, shape index: {}]
  %s2 = inlined_call_operand.vmem [shape: f32[9,256], index: 2, kind: input, shape index: {}]
  %s3 = inlined_call_operand.vmem [shape: f32[16,1], index: 3, kind: input, shape index: {}]
  %s4 = inlined_call_operand.vmem [shape: f32[2,16,1], index: 4, kind: input, shape index: {}]
  %s5 = inlined_call_operand.vmem [shape: f32[2,16,1], index: 5, kind: input, shape index: {}]
  %s6 = inlined_call_operand.vmem [shape: f32[16,16], index: 6, kind: input, shape index: {}]
  %s7 = inlined_call_operand.hbm [shape: f32[2,16,256], index: 7, kind: output, shape index: {}]
  %s8 = sld [smem:[#allocation0]]
  $region65: #{tpu_custom_call.1} parent=0
    _
  %s10 = ssub.s32 1, %s8
  %s11 = scalar_select 0, %s10, %s8
  $region1: #{tpu_custom_call.1} parent=0
    #allocation3 [shape = 'u8[4096]{0}', space=vmem, size = 0x1000, scoped, tag = 'input window, operand 1, single buffered']
    #allocation4 [shape = 's32[2]{0}', space=sflag, size = 0x8, scoped, tag = 'scoped memory for tpu_custom_call.1']
    #allocation5 [shape = 's32[2]{0}', space=sflag, size = 0x8, scoped, tag = 'scoped memory for tpu_custom_call.1']
    #allocation6 [shape = 'u8[32768]{0}', space=vmem, size = 0x8000, scoped, tag = 'output window, operand 0']
    %12 = vsyncpa [#allocation4], 0
    %13 = vsyncpa [#allocation5], 0
    %s14 = scalar_lea.sflag [#allocation5], 1
    %15 = vsyncpa %s14, 0
    loop: start=0, step=1, limit=4
    $region2: #{tpu_custom_call.1} parent=1 // loop_pre_header
      _
    $region3: #{tpu_custom_call.1} parent=1 // loop_header
      %s17 = sphi 0, %s21
      %p18 = scmp.ge.s32.totalorder %s17, 4
      %s27 = sphi 0, %s29
      %s30 = sphi 0, %s27
      %s31 = sphi 0, %s30
      %s47 = sphi 0, %s31
      %s51 = sphi 0, %s51
      %s53 = sphi 0, %s51
      %s54 = sphi 0, %s53
      %s68 = sphi 0, %s54
      %s72 = sphi 0, %s72
      %s74 = sphi 0, %s72
      %s75 = sphi 0, %s74
      %s89 = sphi 0, %s75
      %s93 = sphi 0, %s93
      %s95 = sphi 0, %s93
      %s96 = sphi 0, %s95
      %s110 = sphi 0, %s96
      %s116 = sphi 0, %s118
      %s119 = sphi 0, %s116
      %s120 = sphi 0, %s119
      %s136 = sphi 0, %s120
      %s142 = sphi 0, %s144
      %s145 = sphi 0, %s142
      %s146 = sphi 0, %s145
      %s162 = sphi 0, %s146
      %s166 = sphi 0, %s166
      %s168 = sphi 0, %s166
      %s169 = sphi 0, %s168
      %s183 = sphi 0, %s169
      %s189 = sphi 0, %s191
      %s192 = sphi 0, %s189
      %s193 = sphi 0, %s192
      %s209 = sphi 0, %s193
    $region4: #{tpu_custom_call.1} parent=1 // loop_header_branch
      %20 = sbr.rel (%p18) target = $region8
    $region5: #{tpu_custom_call.1} parent=1 // loop_body
      %s22 = ssub.s32 %s17, 1
      %s23 = ssub.s32 %s17, 2
      %s24 = sadd.s32 %s17, 1
      %s25 = ssub.s32 %s17, %s24
      %p26 = scmp.eq.s32.totalorder %s25, 0
      %s28 = sadd.s32 %s27, 1
      %s29 = scalar_select %p26, %s27, %s28
      %p32 = pneg %p26
      %p33 = scmp.eq.s32.totalorder %s17, 1
      %p34 = por %p32, %p33
      %p35 = scmp.ne.s32.totalorder %s27, %s30
      %p36 = scmp.eq.s32.totalorder %s17, 0
      %p37 = por %p35, %p36
      %p38 = scmp.ne.s32.totalorder %s27, %s30
      %p39 = scmp.eq.s32.totalorder %s22, 1
      %p40 = por %p38, %p39
      %p41 = scmp.ne.s32.totalorder %s30, %s31
      %p42 = scmp.eq.s32.totalorder %s22, 0
      %p43 = por %p41, %p42
      %p44 = scmp.ne.s32.totalorder %s30, %s31
      %p45 = scmp.eq.s32.totalorder %s23, 1
      %p46 = por %p44, %p45
      %p48 = scmp.ne.s32.totalorder %s31, %s47
      %p49 = scmp.eq.s32.totalorder %s23, 0
      %p50 = por %p48, %p49
      %s52 = sadd.s32 %s51, 1
      %p55 = scmp.eq.s32.totalorder %s17, 1
      %p56 = scmp.ne.s32.totalorder %s51, %s53
      %p57 = scmp.eq.s32.totalorder %s17, 0
      %p58 = por %p56, %p57
      %p59 = scmp.ne.s32.totalorder %s51, %s53
      %p60 = scmp.eq.s32.totalorder %s22, 1
      %p61 = por %p59, %p60
      %p62 = scmp.ne.s32.totalorder %s53, %s54
      %p63 = scmp.eq.s32.totalorder %s22, 0
      %p64 = por %p62, %p63
      %p65 = scmp.ne.s32.totalorder %s53, %s54
      %p66 = scmp.eq.s32.totalorder %s23, 1
      %p67 = por %p65, %p66
      %p69 = scmp.ne.s32.totalorder %s54, %s68
      %p70 = scmp.eq.s32.totalorder %s23, 0
      %p71 = por %p69, %p70
      %s73 = sadd.s32 %s72, 1
      %p76 = scmp.eq.s32.totalorder %s17, 1
      %p77 = scmp.ne.s32.totalorder %s72, %s74
      %p78 = scmp.eq.s32.totalorder %s17, 0
      %p79 = por %p77, %p78
      %p80 = scmp.ne.s32.totalorder %s72, %s74
      %p81 = scmp.eq.s32.totalorder %s22, 1
      %p82 = por %p80, %p81
      %p83 = scmp.ne.s32.totalorder %s74, %s75
      %p84 = scmp.eq.s32.totalorder %s22, 0
      %p85 = por %p83, %p84
      %p86 = scmp.ne.s32.totalorder %s74, %s75
      %p87 = scmp.eq.s32.totalorder %s23, 1
      %p88 = por %p86, %p87
      %p90 = scmp.ne.s32.totalorder %s75, %s89
      %p91 = scmp.eq.s32.totalorder %s23, 0
      %p92 = por %p90, %p91
      %s94 = sadd.s32 %s93, 1
      %p97 = scmp.eq.s32.totalorder %s17, 1
      %p98 = scmp.ne.s32.totalorder %s93, %s95
      %p99 = scmp.eq.s32.totalorder %s17, 0
      %p100 = por %p98, %p99
      %p101 = scmp.ne.s32.totalorder %s93, %s95
      %p102 = scmp.eq.s32.totalorder %s22, 1
      %p103 = por %p101, %p102
      %p104 = scmp.ne.s32.totalorder %s95, %s96
      %p105 = scmp.eq.s32.totalorder %s22, 0
      %p106 = por %p104, %p105
      %p107 = scmp.ne.s32.totalorder %s95, %s96
      %p108 = scmp.eq.s32.totalorder %s23, 1
      %p109 = por %p107, %p108
      %p111 = scmp.ne.s32.totalorder %s96, %s110
      %p112 = scmp.eq.s32.totalorder %s23, 0
      %p113 = por %p111, %p112
      %s114 = ssub.s32 %s17, %s24
      %p115 = scmp.eq.s32.totalorder %s114, 0
      %s117 = sadd.s32 %s116, 1
      %s118 = scalar_select %p115, %s116, %s117
      %p121 = pneg %p115
      %p122 = scmp.eq.s32.totalorder %s17, 1
      %p123 = por %p121, %p122
      %p124 = scmp.ne.s32.totalorder %s116, %s119
      %p125 = scmp.eq.s32.totalorder %s17, 0
      %p126 = por %p124, %p125
      %p127 = scmp.ne.s32.totalorder %s116, %s119
      %p128 = scmp.eq.s32.totalorder %s22, 1
      %p129 = por %p127, %p128
      %p130 = scmp.ne.s32.totalorder %s119, %s120
      %p131 = scmp.eq.s32.totalorder %s22, 0
      %p132 = por %p130, %p131
      %p133 = scmp.ne.s32.totalorder %s119, %s120
      %p134 = scmp.eq.s32.totalorder %s23, 1
      %p135 = por %p133, %p134
      %p137 = scmp.ne.s32.totalorder %s120, %s136
      %p138 = scmp.eq.s32.totalorder %s23, 0
      %p139 = por %p137, %p138
      %s140 = ssub.s32 %s17, %s24
      %p141 = scmp.eq.s32.totalorder %s140, 0
      %s143 = sadd.s32 %s142, 1
      %s144 = scalar_select %p141, %s142, %s143
      %p147 = pneg %p141
      %p148 = scmp.eq.s32.totalorder %s17, 1
      %p149 = por %p147, %p148
      %p150 = scmp.ne.s32.totalorder %s142, %s145
      %p151 = scmp.eq.s32.totalorder %s17, 0
      %p152 = por %p150, %p151
      %p153 = scmp.ne.s32.totalorder %s142, %s145
      %p154 = scmp.eq.s32.totalorder %s22, 1
      %p155 = por %p153, %p154
      %p156 = scmp.ne.s32.totalorder %s145, %s146
      %p157 = scmp.eq.s32.totalorder %s22, 0
      %p158 = por %p156, %p157
      %p159 = scmp.ne.s32.totalorder %s145, %s146
      %p160 = scmp.eq.s32.totalorder %s23, 1
      %p161 = por %p159, %p160
      %p163 = scmp.ne.s32.totalorder %s146, %s162
      %p164 = scmp.eq.s32.totalorder %s23, 0
      %p165 = por %p163, %p164
      %s167 = sadd.s32 %s166, 1
      %p170 = scmp.eq.s32.totalorder %s17, 1
      %p171 = scmp.ne.s32.totalorder %s166, %s168
      %p172 = scmp.eq.s32.totalorder %s17, 0
      %p173 = por %p171, %p172
      %p174 = scmp.ne.s32.totalorder %s166, %s168
      %p175 = scmp.eq.s32.totalorder %s22, 1
      %p176 = por %p174, %p175
      %p177 = scmp.ne.s32.totalorder %s168, %s169
      %p178 = scmp.eq.s32.totalorder %s22, 0
      %p179 = por %p177, %p178
      %p180 = scmp.ne.s32.totalorder %s168, %s169
      %p181 = scmp.eq.s32.totalorder %s23, 1
      %p182 = por %p180, %p181
      %p184 = scmp.ne.s32.totalorder %s169, %s183
      %p185 = scmp.eq.s32.totalorder %s23, 0
      %p186 = por %p184, %p185
      %s187 = ssub.s32 %s17, %s24
      %p188 = scmp.eq.s32.totalorder %s187, 0
      %s190 = sadd.s32 %s189, 1
      %s191 = scalar_select %p188, %s189, %s190
      %p194 = pneg %p188
      %p195 = scmp.eq.s32.totalorder %s17, 1
      %p196 = por %p194, %p195
      %p197 = scmp.ne.s32.totalorder %s189, %s192
      %p198 = scmp.eq.s32.totalorder %s17, 0
      %p199 = por %p197, %p198
      %p200 = scmp.ne.s32.totalorder %s189, %s192
      %p201 = scmp.eq.s32.totalorder %s22, 1
      %p202 = por %p200, %p201
      %p203 = scmp.ne.s32.totalorder %s192, %s193
      %p204 = scmp.eq.s32.totalorder %s22, 0
      %p205 = por %p203, %p204
      %p206 = scmp.ne.s32.totalorder %s192, %s193
      %p207 = scmp.eq.s32.totalorder %s23, 1
      %p208 = por %p206, %p207
      %p210 = scmp.ne.s32.totalorder %s193, %s209
      %p211 = scmp.eq.s32.totalorder %s23, 0
      %p212 = por %p210, %p211
      %p213 = scmp.le.s32.totalorder 1, %s17
      %p214 = scmp.lt.s32.totalorder %s17, 3
      %p215 = pnand %p213, %p214
      %p216 = pneg %p215
      // Predicated region
      $region9: #{tpu_custom_call.1} parent=5 // pred_check
        _
      $region10: #{tpu_custom_call.1} parent=5 // pred_check_branch
        %218 = sbr.rel (%p215) target = $region12
      $region11: #{tpu_custom_call.1} parent=5 // pred_region
        %s219 = ssub.s32 %s17, 1
        // Predicated region
        $region13: #{tpu_custom_call.1} parent=11 // pred_check
          %p220 = pneg %p64
        $region14: #{tpu_custom_call.1} parent=11 // pred_check_branch
          %222 = sbr.rel (%p220) target = $region16
        $region15: #{tpu_custom_call.1} parent=11 // pred_region
          %s224 = ssub.s32 128, 128
          %225 = vsyncadd [#allocation4], %s224
          %s226 = sshll.u32 [#allocation3], 4
          %s227 = int_to_ptr.vmem [resolvable:$true] %s226
          %232 = dma.hbm_to_vmem [thread:$0]  %s1, 128, %s227, [#allocation4], 64, 64, 4
        $region16: #{tpu_custom_call.1} parent=11 // pred_fallthru
          _
        // Predicated region
        $region17: #{tpu_custom_call.1} parent=11 // pred_check
          %p233 = pneg %p85
        $region18: #{tpu_custom_call.1} parent=11 // pred_check_branch
          %235 = sbr.rel (%p233) target = $region20
        $region19: #{tpu_custom_call.1} parent=11 // pred_region
          _
        $region20: #{tpu_custom_call.1} parent=11 // pred_fallthru
          _
        // Predicated region
        $region21: #{tpu_custom_call.1} parent=11 // pred_check
          %p236 = pneg %p106
        $region22: #{tpu_custom_call.1} parent=11 // pred_check_branch
          %238 = sbr.rel (%p236) target = $region24
        $region23: #{tpu_custom_call.1} parent=11 // pred_region
          _
        $region24: #{tpu_custom_call.1} parent=11 // pred_fallthru
          _
        // Predicated region
        $region25: #{tpu_custom_call.1} parent=11 // pred_check
          %p239 = pneg %p179
        $region26: #{tpu_custom_call.1} parent=11 // pred_check_branch
          %241 = sbr.rel (%p239) target = $region28
        $region27: #{tpu_custom_call.1} parent=11 // pred_region
          _
        $region28: #{tpu_custom_call.1} parent=11 // pred_fallthru
          _
      $region12: #{tpu_custom_call.1} parent=5 // pred_fallthru
        _
      %p242 = scmp.lt.s32.totalorder %s17, 2
      // Predicated region
      $region29: #{tpu_custom_call.1} parent=5 // pred_check
        %p243 = pneg %p242
      $region30: #{tpu_custom_call.1} parent=5 // pred_check_branch
        %245 = sbr.rel (%p243) target = $region32
      $region31: #{tpu_custom_call.1} parent=5 // pred_region
        // Predicated region
        $region33: #{tpu_custom_call.1} parent=31 // pred_check
          %p246 = pneg %p37
        $region34: #{tpu_custom_call.1} parent=31 // pred_check_branch
          %248 = sbr.rel (%p246) target = $region36
        $region35: #{tpu_custom_call.1} parent=31 // pred_region
          %p249 = scmp.lt.s32.totalorder %s17, 1
          %s250 = scalar_select %p249, %s17, 1
          %s251 = smul.addr %s250, 2
          %s252 = smul.addr %s251, 8
          %s253 = scalar_lea.vmem %s0, %s252
        $region36: #{tpu_custom_call.1} parent=31 // pred_fallthru
          _
        // Predicated region
        $region37: #{tpu_custom_call.1} parent=31 // pred_check
          %p254 = pneg %p126
        $region38: #{tpu_custom_call.1} parent=31 // pred_check_branch
          %256 = sbr.rel (%p254) target = $region40
        $region39: #{tpu_custom_call.1} parent=31 // pred_region
          %p257 = scmp.lt.s32.totalorder %s17, 1
          %s258 = scalar_select %p257, %s17, 1
          %s259 = smul.addr %s258, 2
          %s260 = smul.addr %s259, 8
          %s261 = scalar_lea.vmem %s4, %s260
        $region40: #{tpu_custom_call.1} parent=31 // pred_fallthru
          _
        // Predicated region
        $region41: #{tpu_custom_call.1} parent=31 // pred_check
          %p262 = pneg %p152
        $region42: #{tpu_custom_call.1} parent=31 // pred_check_branch
          %264 = sbr.rel (%p262) target = $region44
        $region43: #{tpu_custom_call.1} parent=31 // pred_region
          %p265 = scmp.lt.s32.totalorder %s17, 1
          %s266 = scalar_select %p265, %s17, 1
          %s267 = smul.addr %s266, 2
          %s268 = smul.addr %s267, 8
          %s269 = scalar_lea.vmem %s5, %s268
        $region44: #{tpu_custom_call.1} parent=31 // pred_fallthru
          _
      $region32: #{tpu_custom_call.1} parent=5 // pred_fallthru
        _
      %p270 = scmp.le.s32.totalorder 1, %s17
      %p271 = scmp.lt.s32.totalorder %s17, 3
      %p272 = pnand %p270, %p271
      %p273 = pneg %p272
      // Predicated region
      $region45: #{tpu_custom_call.1} parent=5 // pred_check
        _
      $region46: #{tpu_custom_call.1} parent=5 // pred_check_branch
        %275 = sbr.rel (%p272) target = $region48
      $region47: #{tpu_custom_call.1} parent=5 // pred_region
        %s276 = ssub.s32 %s17, 1
        // Predicated region
        $region49: #{tpu_custom_call.1} parent=47 // pred_check
          %p277 = pneg %p64
        $region50: #{tpu_custom_call.1} parent=47 // pred_check_branch
          %279 = sbr.rel (%p277) target = $region52
        $region51: #{tpu_custom_call.1} parent=47 // pred_region
          %280 = dma.done [#allocation4], 128
        $region52: #{tpu_custom_call.1} parent=47 // pred_fallthru
          _
        %p281 = scmp.lt.s32.totalorder %s22, 1
        %s282 = scalar_select %p281, %s22, 1
        %s283 = smul.addr %s282, 2
        %s284 = smul.addr %s283, 8
        %s285 = scalar_lea.vmem %s0, %s284
        %p286 = pneg %p43
        %p287 = pneg %p40
        %p288 = pneg %p64
        %p289 = pneg %p61
        %p290 = pneg %p85
        %p291 = pneg %p82
        %p292 = pneg %p106
        %p293 = pneg %p103
        %p294 = scmp.lt.s32.totalorder %s22, 1
        %s295 = scalar_select %p294, %s22, 1
        %s296 = smul.addr %s295, 2
        %s297 = smul.addr %s296, 8
        %s298 = scalar_lea.vmem %s4, %s297
        %p299 = pneg %p132
        %p300 = pneg %p129
        %p301 = scmp.lt.s32.totalorder %s22, 1
        %s302 = scalar_select %p301, %s22, 1
        %s303 = smul.addr %s302, 2
        %s304 = smul.addr %s303, 8
        %s305 = scalar_lea.vmem %s5, %s304
        %p306 = pneg %p158
        %p307 = pneg %p155
        %p308 = pneg %p179
        %p309 = pneg %p176
        %p310 = pneg %p205
        %p311 = pneg %p202
        %s312 = sand.u32 %s192, 1
        %s313 = scalar_lea.sflag [#allocation5], %s312
        %s314 = sand.u32 %s192, 1
        %s315 = smul.addr %s314, 32
        %s316 = scalar_lea.vmem [#allocation6], %s315
        %p317 = scmp.lt.s32.totalorder %s22, 1
        %s318 = scalar_select %p317, %s22, 1
        %s319 = smul.addr %s318, 2
        %s320 = smul.addr %s319, 8
        %s321 = scalar_lea.vmem %s0, %s320
        %p322 = scmp.lt.s32.totalorder %s22, 1
        %s323 = scalar_select %p322, %s22, 1
        %s324 = smul.addr %s323, 2
        %s325 = smul.addr %s324, 8
        %s326 = scalar_lea.vmem %s4, %s325
        %p327 = scmp.lt.s32.totalorder %s22, 1
        %s328 = scalar_select %p327, %s22, 1
        %s329 = smul.addr %s328, 2
        %s330 = smul.addr %s329, 8
        %s331 = scalar_lea.vmem %s5, %s330
        %v333 = vld [vmem:[%s321] sm:$0xff]
        %v334 = vld [vmem:[%s321 + $0x8] sm:$0xff]
        %v335 = vld [vmem:[%s2] sm:$0xff]
        %v336 = vld [vmem:[%s2 + $0x8] sm:$0xff]
        %v337 = vld [vmem:[%s2 + $0x10] sm:$0x1]
        %v338 = vld [vmem:[%s2 + $0x18] sm:$0x1]
        %339 = vrot.lane.b32.xlu0 %v333, 17
        %v340 = vpop.permute.xlu0 %339
        %341 = vrot.lane.b32.xlu0 %v334, 17
        %v342 = vpop.permute.xlu0 %341
        %v343 = vlaneseq
        %v344 = vand.u32 %v343, 127
        %vm345 = vcmp.lt.s32.totalorder %v344, 17
        %v346 = vsel %vm345, %v340, %v342
        %v347 = vsel %vm345, %v342, %v340
        %v348 = vlaneseq
        %v349 = vshrl.u32 %v348, 7
        %v350 = vsub.s32 0, %v349
        %v351 = vrot.slane %v335, %v350
        %v352 = vlaneseq
        %v353 = vshrl.u32 %v352, 7
        %v354 = vsub.s32 0, %v353
        %v355 = vrot.slane %v336, %v354
        %v356 = vmul.f32 %v347, %v351
        %v357 = vmul.f32 %v346, %v355
        %v358 = vpack.c.bf16 %v356, %v356
        %v359 = vpack.c.bf16 %v357, %v357
        %v362 = vunpack.c.l.b16 %v358
        %v363 = vunpack.c.l.b16 %v359
        %v364 = vpack.c.b16 %v363, %v362
        %366 = vst [vmem:[#allocation2] sm:$0xff] %v364
        %367 = vrot.lane.b32.xlu0 %v333, 16
        %v368 = vpop.permute.xlu0 %367
        %369 = vrot.lane.b32.xlu0 %v334, 16
        %v370 = vpop.permute.xlu0 %369
        %vm371 = vcmp.lt.s32.totalorder %v344, 16
        %v372 = vsel %vm371, %v368, %v370
        %v373 = vsel %vm371, %v370, %v368
        %v374 = vlaneseq
        %v375 = vshrl.u32 %v374, 7
        %v376 = vsub.s32 1, %v375
        %v377 = vrot.slane %v335, %v376
        %v378 = vlaneseq
        %v379 = vshrl.u32 %v378, 7
        %v380 = vsub.s32 1, %v379
        %v381 = vrot.slane %v336, %v380
        %v382 = vmul.f32 %v373, %v377
        %v383 = vmul.f32 %v372, %v381
        %v384 = vpack.c.bf16 %v382, %v382
        %v385 = vpack.c.bf16 %v383, %v383
        %v388 = vunpack.c.l.b16 %v384
        %v389 = vunpack.c.l.b16 %v385
        %v390 = vpack.c.b16 %v389, %v388
        %392 = vst [vmem:[#allocation2 + $0x8] sm:$0xff] %v390
        %393 = vrot.lane.b32.xlu0 %v333, 15
        %v394 = vpop.permute.xlu0 %393
        %395 = vrot.lane.b32.xlu0 %v334, 15
        %v396 = vpop.permute.xlu0 %395
        %vm397 = vcmp.lt.s32.totalorder %v344, 15
        %v398 = vsel %vm397, %v394, %v396
        %v399 = vsel %vm397, %v396, %v394
        %v400 = vlaneseq
        %v401 = vshrl.u32 %v400, 7
        %v402 = vsub.s32 2, %v401
        %v403 = vrot.slane %v335, %v402
        %v404 = vlaneseq
        %v405 = vshrl.u32 %v404, 7
        %v406 = vsub.s32 2, %v405
        %v407 = vrot.slane %v336, %v406
        %v408 = vmul.f32 %v399, %v403
        %v409 = vmul.f32 %v398, %v407
        %v410 = vpack.c.bf16 %v408, %v408
        %v411 = vpack.c.bf16 %v409, %v409
        %v414 = vunpack.c.l.b16 %v410
        %v415 = vunpack.c.l.b16 %v411
        %v416 = vpack.c.b16 %v415, %v414
        %418 = vst [vmem:[#allocation2 + $0x10] sm:$0xff] %v416
        %419 = vrot.lane.b32.xlu0 %v333, 1
        %v420 = vpop.permute.xlu0 %419
        %421 = vrot.lane.b32.xlu0 %v334, 1
        %v422 = vpop.permute.xlu0 %421
        %vm423 = vcmp.lt.s32.totalorder %v344, 1
        %v424 = vsel %vm423, %v420, %v422
        %v425 = vsel %vm423, %v422, %v420
        %v426 = vlaneseq
        %v427 = vshrl.u32 %v426, 7
        %v428 = vsub.s32 3, %v427
        %v429 = vrot.slane %v335, %v428
        %v430 = vlaneseq
        %v431 = vshrl.u32 %v430, 7
        %v432 = vsub.s32 3, %v431
        %v433 = vrot.slane %v336, %v432
        %v434 = vmul.f32 %v425, %v429
        %v435 = vmul.f32 %v424, %v433
        %v436 = vpack.c.bf16 %v434, %v434
        %v437 = vpack.c.bf16 %v435, %v435
        %v440 = vunpack.c.l.b16 %v436
        %v441 = vunpack.c.l.b16 %v437
        %v442 = vpack.c.b16 %v441, %v440
        %444 = vst [vmem:[#allocation2 + $0x18] sm:$0xff] %v442
        %v445 = vlaneseq
        %v446 = vshrl.u32 %v445, 7
        %v447 = vsub.s32 4, %v446
        %v448 = vrot.slane %v335, %v447
        %v449 = vlaneseq
        %v450 = vshrl.u32 %v449, 7
        %v451 = vsub.s32 4, %v450
        %v452 = vrot.slane %v336, %v451
        %v453 = vmul.f32 %v333, %v448
        %v454 = vmul.f32 %v334, %v452
        %v455 = vpack.c.bf16 %v453, %v453
        %v456 = vpack.c.bf16 %v454, %v454
        %v459 = vunpack.c.l.b16 %v455
        %v460 = vunpack.c.l.b16 %v456
        %v461 = vpack.c.b16 %v460, %v459
        %463 = vst [vmem:[#allocation2 + $0x20] sm:$0xff] %v461
        %464 = vrot.lane.b32.xlu0 %v333, 127
        %v465 = vpop.permute.xlu0 %464
        %466 = vrot.lane.b32.xlu0 %v334, 127
        %v467 = vpop.permute.xlu0 %466
        %vm468 = vcmp.lt.s32.totalorder %v344, 127
        %v469 = vsel %vm468, %v465, %v467
        %v470 = vsel %vm468, %v467, %v465
        %v471 = vlaneseq
        %v472 = vshrl.u32 %v471, 7
        %v473 = vsub.s32 5, %v472
        %v474 = vrot.slane %v335, %v473
        %v475 = vlaneseq
        %v476 = vshrl.u32 %v475, 7
        %v477 = vsub.s32 5, %v476
        %v478 = vrot.slane %v336, %v477
        %v479 = vmul.f32 %v469, %v474
        %v480 = vmul.f32 %v470, %v478
        %v481 = vpack.c.bf16 %v479, %v479
        %v482 = vpack.c.bf16 %v480, %v480
        %v485 = vunpack.c.l.b16 %v481
        %v486 = vunpack.c.l.b16 %v482
        %v487 = vpack.c.b16 %v486, %v485
        %489 = vst [vmem:[#allocation2 + $0x28] sm:$0xff] %v487
        %490 = vrot.lane.b32.xlu0 %v333, 113
        %v491 = vpop.permute.xlu0 %490
        %492 = vrot.lane.b32.xlu0 %v334, 113
        %v493 = vpop.permute.xlu0 %492
        %vm494 = vcmp.lt.s32.totalorder %v344, 113
        %v495 = vsel %vm494, %v491, %v493
        %v496 = vsel %vm494, %v493, %v491
        %v497 = vlaneseq
        %v498 = vshrl.u32 %v497, 7
        %v499 = vsub.s32 6, %v498
        %v500 = vrot.slane %v335, %v499
        %v501 = vlaneseq
        %v502 = vshrl.u32 %v501, 7
        %v503 = vsub.s32 6, %v502
        %v504 = vrot.slane %v336, %v503
        %v505 = vmul.f32 %v495, %v500
        %v506 = vmul.f32 %v496, %v504
        %v507 = vpack.c.bf16 %v505, %v505
        %v508 = vpack.c.bf16 %v506, %v506
        %v511 = vunpack.c.l.b16 %v507
        %v512 = vunpack.c.l.b16 %v508
        %v513 = vpack.c.b16 %v512, %v511
        %515 = vst [vmem:[#allocation2 + $0x30] sm:$0xff] %v513
        %516 = vrot.lane.b32.xlu0 %v333, 112
        %v517 = vpop.permute.xlu0 %516
        %518 = vrot.lane.b32.xlu0 %v334, 112
        %v519 = vpop.permute.xlu0 %518
        %vm520 = vcmp.lt.s32.totalorder %v344, 112
        %v521 = vsel %vm520, %v517, %v519
        %v522 = vsel %vm520, %v519, %v517
        %v523 = vlaneseq
        %v524 = vshrl.u32 %v523, 7
        %v525 = vsub.s32 7, %v524
        %v526 = vrot.slane %v335, %v525
        %v527 = vlaneseq
        %v528 = vshrl.u32 %v527, 7
        %v529 = vsub.s32 7, %v528
        %v530 = vrot.slane %v336, %v529
        %v531 = vmul.f32 %v521, %v526
        %v532 = vmul.f32 %v522, %v530
        %v533 = vpack.c.bf16 %v531, %v531
        %v534 = vpack.c.bf16 %v532, %v532
        %v537 = vunpack.c.l.b16 %v533
        %v538 = vunpack.c.l.b16 %v534
        %v539 = vpack.c.b16 %v538, %v537
        %541 = vst [vmem:[#allocation2 + $0x38] sm:$0xff] %v539
        %542 = vrot.lane.b32.xlu0 %v333, 111
        %v543 = vpop.permute.xlu0 %542
        %544 = vrot.lane.b32.xlu0 %v334, 111
        %v545 = vpop.permute.xlu0 %544
        %vm546 = vcmp.lt.s32.totalorder %v344, 111
        %v547 = vsel %vm546, %v543, %v545
        %v548 = vsel %vm546, %v545, %v543
        %v549 = vlaneseq
        %v550 = vshrl.u32 %v549, 7
        %v551 = vsub.s32 0, %v550
        %v552 = vrot.slane %v337, %v551
        %v553 = vlaneseq
        %v554 = vshrl.u32 %v553, 7
        %v555 = vsub.s32 0, %v554
        %v556 = vrot.slane %v338, %v555
        %v557 = vmul.f32 %v547, %v552
        %v558 = vmul.f32 %v548, %v556
        %v559 = vpack.c.bf16 %v557, %v557
        %v560 = vpack.c.bf16 %v558, %v558
        %v563 = vunpack.c.l.b16 %v559
        %v564 = vunpack.c.l.b16 %v560
        %v565 = vpack.c.b16 %v564, %v563
        %567 = vst [vmem:[#allocation2 + $0x40] sm:$0xff] %v565
        %v568 = vld [vmem:[#allocation3] sm:$0xf]
        %v569 = vld [vmem:[#allocation3 + $0x4] sm:$0xf]
        %v570 = vld [vmem:[#allocation2] sm:$0xff]
        %v571 = vld [vmem:[#allocation2 + $0x8] sm:$0xff]
        %v572 = vld [vmem:[#allocation2 + $0x10] sm:$0xff]
        %v573 = vld [vmem:[#allocation2 + $0x18] sm:$0xff]
        %v574 = vld [vmem:[#allocation2 + $0x20] sm:$0xff]
        %v575 = vld [vmem:[#allocation2 + $0x28] sm:$0xff]
        %v576 = vld [vmem:[#allocation2 + $0x30] sm:$0xff]
        %v577 = vld [vmem:[#allocation2 + $0x38] sm:$0xff]
        %v578 = vld [vmem:[#allocation2 + $0x40] sm:$0xff]
        %v579 = vld [vmem:[%s3] sm:$0xff]
        %v580 = vld [vmem:[%s3 + $0x8] sm:$0xff]
        %582 = vset.pattern.permute.xlu0 0
        %583 = vperm.xlu0 %582, %v579
        %v584 = vpop.permute.xlu0 %583
        %587 = vset.pattern.permute.xlu0 0
        %588 = vperm.xlu0 %587, %v580
        %v589 = vpop.permute.xlu0 %588
        %v593 = vunpack.c.l.b16 %v568
        %v594 = vunpack.c.l.b16 %v569
        %v595 = vpack.c.b16 %v594, %v593
        %v605 = vunpack.c.l.b16 %v570
        %v606 = vunpack.c.h.b16 %v570
        %v607 = vunpack.c.l.b16 %v571
        %v608 = vunpack.c.h.b16 %v571
        %v609 = vunpack.c.l.b16 %v572
        %v610 = vunpack.c.h.b16 %v572
        %v611 = vunpack.c.l.b16 %v573
        %v612 = vunpack.c.h.b16 %v573
        %v613 = vunpack.c.l.b16 %v574
        %v614 = vunpack.c.h.b16 %v574
        %v615 = vunpack.c.l.b16 %v575
        %v616 = vunpack.c.h.b16 %v575
        %v617 = vunpack.c.l.b16 %v576
        %v618 = vunpack.c.h.b16 %v576
        %v619 = vunpack.c.l.b16 %v577
        %v620 = vunpack.c.h.b16 %v577
        %v621 = vunpack.c.l.b16 %v578
        %v622 = vunpack.c.h.b16 %v578
        %v623 = vpack.c.b16 %v607, %v605
        %v624 = vpack.c.b16 %v608, %v606
        %v625 = vpack.c.b16 %v611, %v609
        %v626 = vpack.c.b16 %v612, %v610
        %v627 = vpack.c.b16 %v615, %v613
        %v628 = vpack.c.b16 %v616, %v614
        %v629 = vpack.c.b16 %v619, %v617
        %v630 = vpack.c.b16 %v620, %v618
        %v631 = vpack.c.b16 %v621, %v621
        %v632 = vpack.c.b16 %v622, %v622
        %vm641 = vcmask 588800
        %v643 = vsel %vm641, %v595, 0
        %vm645 = vcmask 1043456
        %v647 = vsel %vm645, %v631, 0
        %v650 = vsel %vm645, %v632, 0
        %652 = vmatprep.subr.bf16.mxu0 0
        %653 = vmatpush1.bf16.msra.mxu0 0
        %654 = vmatprep.subr.bf16.mxu0 0
        %655 = vmatpush1.bf16.msra.mxu0 0
        %656 = vmatprep.subr.bf16.mxu0 0
        %657 = vmatpush1.bf16.msra.mxu0 0
        %658 = vmatprep.subr.bf16.mxu0 %v650
        %659 = vmatpush1.bf16.msra.mxu0 %v647
        %660 = vmatprep.subr.bf16.mxu0 %v630
        %661 = vmatpush1.bf16.msra.mxu0 %v629
        %662 = vmatprep.subr.bf16.mxu0 %v628
        %663 = vmatpush1.bf16.msra.mxu0 %v627
        %664 = vmatprep.subr.bf16.mxu0 %v626
        %665 = vmatpush1.bf16.msra.mxu0 %v625
        %666 = vmatprep.subr.bf16.mxu0 %v624
        %667 = vmatpush1.bf16.msra.mxu0 %v623
        %668 = vmatprep.subr.bf16.mxu0 0
        %669 = vmatpush2.bf16.msra.mxu0 0
        %670 = vmatprep.subr.bf16.mxu0 0
        %671 = vmatpush2.bf16.msra.mxu0 0
        %672 = vmatprep.subr.bf16.mxu0 0
        %673 = vmatpush2.bf16.msra.mxu0 0
        %674 = vmatprep.subr.bf16.mxu0 0
        %675 = vmatpush2.bf16.msra.mxu0 0
        %676 = vmatprep.subr.bf16.mxu0 0
        %677 = vmatpush2.bf16.msra.mxu0 0
        %678 = vmatprep.subr.bf16.mxu0 0
        %679 = vmatpush2.bf16.msra.mxu0 0
        %680 = vmatprep.subr.bf16.mxu0 0
        %681 = vmatpush2.bf16.msra.mxu0 0
        %682 = vmatprep.subr.bf16.mxu0 0
        %683 = vmatpush2.bf16.msra.mxu0 0
        %684 = vmatprep.mubr.bf16.mxu0 0
        %685 = vmatmul.mubr.bf16.gmra.mxu0 %v643
        %v686 = vpop.f32.mrf.mxu0
        %v687 = vadd.f32 %v584, %v686
        %v688 = vpop.f32.mrf.mxu0
        %v689 = vadd.f32 %v584, %v688
        %v690 = vpop.f32.mrf.mxu0
        %v691 = vadd.f32 %v589, %v690
        %v692 = vpop.f32.mrf.mxu0
        %v693 = vadd.f32 %v589, %v692
        %694 = vdwg.mxu0
        %v695 = vadd.f32 %v687, %v689
        %696 = vadd.xlane.f32.xlu0 %v695
        %v697 = vpop.xlane.xlu0 %696
        %v698 = vadd.f32 %v691, %v693
        %699 = vadd.xlane.f32.xlu0 %v698
        %v700 = vpop.xlane.xlu0 %699
        %v701 = vmul.f32 %v697, 0.00390625
        %v702 = vmul.f32 %v700, 0.00390625
        %v703 = vmul.f32 %v687, %v687
        %v704 = vmul.f32 %v689, %v689
        %v705 = vmul.f32 %v691, %v691
        %v706 = vmul.f32 %v693, %v693
        %v707 = vadd.f32 %v703, %v704
        %708 = vadd.xlane.f32.xlu0 %v707
        %v709 = vpop.xlane.xlu0 %708
        %v710 = vadd.f32 %v705, %v706
        %711 = vadd.xlane.f32.xlu0 %v710
        %v712 = vpop.xlane.xlu0 %711
        %v713 = vmul.f32 %v709, 0.00390625
        %v714 = vmul.f32 %v712, 0.00390625
        %vm715 = vcmask 7168
        %v716 = vsel %vm715, %v701, %v713
        %v717 = vsel %vm715, %v702, %v714
        %v718 = vld [vmem:[%s6] sm:$0xff]
        %v719 = vld [vmem:[%s6 + $0x8] sm:$0xff]
        %vm720 = vcmask 130048
        %v722 = vsel %vm720, %v718, 0
        %v725 = vsel %vm720, %v719, 0
        %727 = vmatprep.subr.mxu0 0.0
        %728 = vmatpush1.msra.mxu0 0.0
        %729 = vmatprep.subr.mxu0 0.0
        %730 = vmatpush1.msra.mxu0 0.0
        %731 = vmatprep.subr.mxu0 0.0
        %732 = vmatpush1.msra.mxu0 0.0
        %733 = vmatprep.subr.mxu0 0.0
        %734 = vmatpush1.msra.mxu0 0.0
        %735 = vmatprep.subr.mxu0 0.0
        %736 = vmatpush1.msra.mxu0 0.0
        %737 = vmatprep.subr.mxu0 0.0
        %738 = vmatpush1.msra.mxu0 0.0
        %739 = vmatprep.subr.mxu0 0.0
        %740 = vmatpush1.msra.mxu0 0.0
        %741 = vmatprep.subr.mxu0 0.0
        %742 = vmatpush1.msra.mxu0 0.0
        %743 = vmatprep.subr.mxu0 0.0
        %744 = vmatpush1.msra.mxu0 0.0
        %745 = vmatprep.subr.mxu0 0.0
        %746 = vmatpush1.msra.mxu0 0.0
        %747 = vmatprep.subr.mxu0 0.0
        %748 = vmatpush1.msra.mxu0 0.0
        %749 = vmatprep.subr.mxu0 0.0
        %750 = vmatpush1.msra.mxu0 0.0
        %751 = vmatprep.subr.mxu0 0.0
        %752 = vmatpush1.msra.mxu0 0.0
        %753 = vmatprep.subr.mxu0 0.0
        %754 = vmatpush1.msra.mxu0 0.0
        %755 = vmatprep.subr.mxu0 0.0
        %756 = vmatpush1.msra.mxu0 %v717
        %757 = vmatprep.subr.mxu0 0.0
        %758 = vmatpush1.msra.mxu0 %v716
        %759 = vmatprep.subr.mxu0 0.0
        %760 = vmatpush2.msra.mxu0 0.0
        %761 = vmatprep.subr.mxu0 0.0
        %762 = vmatpush2.msra.mxu0 0.0
        %763 = vmatprep.subr.mxu0 0.0
        %764 = vmatpush2.msra.mxu0 0.0
        %765 = vmatprep.subr.mxu0 0.0
        %766 = vmatpush2.msra.mxu0 0.0
        %767 = vmatprep.subr.mxu0 0.0
        %768 = vmatpush2.msra.mxu0 0.0
        %769 = vmatprep.subr.mxu0 0.0
        %770 = vmatpush2.msra.mxu0 0.0
        %771 = vmatprep.subr.mxu0 0.0
        %772 = vmatpush2.msra.mxu0 0.0
        %773 = vmatprep.subr.mxu0 0.0
        %774 = vmatpush2.msra.mxu0 0.0
        %775 = vmatprep.subr.mxu0 0.0
        %776 = vmatpush2.msra.mxu0 0.0
        %777 = vmatprep.subr.mxu0 0.0
        %778 = vmatpush2.msra.mxu0 0.0
        %779 = vmatprep.subr.mxu0 0.0
        %780 = vmatpush2.msra.mxu0 0.0
        %781 = vmatprep.subr.mxu0 0.0
        %782 = vmatpush2.msra.mxu0 0.0
        %783 = vmatprep.subr.mxu0 0.0
        %784 = vmatpush2.msra.mxu0 0.0
        %785 = vmatprep.subr.mxu0 0.0
        %786 = vmatpush2.msra.mxu0 0.0
        %787 = vmatprep.subr.mxu0 0.0
        %788 = vmatpush2.msra.mxu0 0.0
        %789 = vmatprep.subr.mxu0 0.0
        %790 = vmatpush2.msra.mxu0 0.0
        %791 = vmatprep.mubr.f32.mxu0 0.0
        %792 = vmatmul.mubr.f32.gmra.mxu0 %v722
        %v793 = vpop.f32.mrf.mxu0
        %v794 = vadd.f32 0.0, %v793
        %v795 = vpop.f32.mrf.mxu0
        %796 = vmatprep.mubr.f32.mxu0 0.0
        %797 = vmatmul.mubr.f32.gmra.mxu0 %v725
        %v798 = vpop.f32.mrf.mxu0
        %v799 = vadd.f32 0.0, %v798
        %v800 = vpop.f32.mrf.mxu0
        %801 = vdwg.mxu0
        %v802 = vmul.f32 %v794, %v794
        %v803 = vmul.f32 %v799, %v799
        %806 = vrot.lane.b32.xlu0 %v802, 1
        %v807 = vpop.permute.xlu0 %806
        %808 = vrot.lane.b32.xlu0 %v803, 1
        %v809 = vpop.permute.xlu0 %808
        %v812 = vsub.f32 %v794, %v807
        %v813 = vsub.f32 %v799, %v809
        %v814 = vadd.f32 %v812, 1e-05
        %v815 = vadd.f32 %v813, 1e-05
        %v816 = vrsqrt.pop %v814
        %v817 = vrsqrt.pop %v815
        %v818 = vld [vmem:[%s326] sm:$0xff]
        %v819 = vld [vmem:[%s326 + $0x8] sm:$0xff]
        %822 = vrot.lane.b32.xlu0 %v818, 1
        %v823 = vpop.permute.xlu0 %822
        %824 = vrot.lane.b32.xlu0 %v819, 1
        %v825 = vpop.permute.xlu0 %824
        %v828 = vmul.f32 %v816, %v823
        %v829 = vmul.f32 %v817, %v825
        %v830 = vld [vmem:[%s331] sm:$0xff]
        %v831 = vld [vmem:[%s331 + $0x8] sm:$0xff]
        %834 = vrot.lane.b32.xlu0 %v828, 127
        %v835 = vpop.permute.xlu0 %834
        %836 = vrot.lane.b32.xlu0 %v829, 127
        %v837 = vpop.permute.xlu0 %836
        %v840 = vmul.f32 %v794, %v835
        %v841 = vmul.f32 %v799, %v837
        %v842 = vsub.f32 %v830, %v840
        %v843 = vsub.f32 %v831, %v841
        %844 = vset.pattern.permute.xlu0 1
        %845 = vperm.xlu0 %844, %v828
        %v846 = vpop.permute.xlu0 %845
        %848 = vset.pattern.permute.xlu0 1
        %849 = vperm.xlu0 %848, %v829
        %v850 = vpop.permute.xlu0 %849
        %v852 = vmul.f32 %v687, %v846
        %v853 = vmul.f32 %v689, %v846
        %v854 = vmul.f32 %v691, %v850
        %v855 = vmul.f32 %v693, %v850
        %857 = vset.pattern.permute.xlu0 0
        %858 = vperm.xlu0 %857, %v842
        %v859 = vpop.permute.xlu0 %858
        %862 = vset.pattern.permute.xlu0 0
        %863 = vperm.xlu0 %862, %v843
        %v864 = vpop.permute.xlu0 %863
        %v866 = vadd.f32 %v852, %v859
        %v867 = vadd.f32 %v853, %v859
        %v868 = vadd.f32 %v854, %v864
        %v869 = vadd.f32 %v855, %v864
        %v870 = vxor.u32 %v866, 2147483648
        %v871 = vxor.u32 %v867, 2147483648
        %v872 = vxor.u32 %v868, 2147483648
        %v873 = vxor.u32 %v869, 2147483648
        %v874 = vmul.f32 %v870, 1.442695
        %v875 = vpow.pop %v874
        %v876 = vmul.f32 %v871, 1.442695
        %v877 = vpow.pop %v876
        %v878 = vmul.f32 %v872, 1.442695
        %v879 = vpow.pop %v878
        %v880 = vmul.f32 %v873, 1.442695
        %v881 = vpow.pop %v880
        %v882 = vadd.f32 %v875, 1.0
        %v883 = vadd.f32 %v877, 1.0
        %v884 = vadd.f32 %v879, 1.0
        %v885 = vadd.f32 %v881, 1.0
        %v886 = vrcp.pop %v882
        %v887 = vmul.f32 1.0, %v886
        %v888 = vrcp.pop %v883
        %v889 = vmul.f32 1.0, %v888
        %v890 = vrcp.pop %v884
        %v891 = vmul.f32 1.0, %v890
        %v892 = vrcp.pop %v885
        %v893 = vmul.f32 1.0, %v892
        %v894 = vmul.f32 %v866, %v887
        %v895 = vmul.f32 %v867, %v889
        %v896 = vmul.f32 %v868, %v891
        %v897 = vmul.f32 %v869, %v893
        %898 = vst [vmem:[%s316] sm:$0xff] %v894
        %899 = vst [vmem:[%s316 + $0x8] sm:$0xff] %v895
        %900 = vst [vmem:[%s316 + $0x10] sm:$0xff] %v896
        %901 = vst [vmem:[%s316 + $0x18] sm:$0xff] %v897
        %s902 = sand.u32 %s192, 1
        %s903 = scalar_lea.sflag [#allocation5], %s902
        %s904 = sand.u32 %s192, 1
        %s905 = smul.addr %s904, 32
        %s906 = scalar_lea.vmem [#allocation6], %s905
        // Predicated region
        $region53: #{tpu_custom_call.1} parent=47 // pred_check
          %p907 = pneg %p202
        $region54: #{tpu_custom_call.1} parent=47 // pred_check_branch
          %909 = sbr.rel (%p907) target = $region56
        $region55: #{tpu_custom_call.1} parent=47 // pred_region
          %s911 = ssub.s32 512, 512
          %912 = vsyncadd %s903, %s911
          %s913 = smul.addr %s22, 4
          %s914 = smul.addr %s913, 128
          %s915 = scalar_lea.hbm %s7, %s914
          %s916 = sshll.u32 %s906, 4
          %s917 = int_to_ptr.vmem [resolvable:$true] %s916
          %922 = dma.vmem_to_hbm [thread:$0]  %s917, 512, %s915, %s903, 256, 256, 16
        $region56: #{tpu_custom_call.1} parent=47 // pred_fallthru
          _
      $region48: #{tpu_custom_call.1} parent=5 // pred_fallthru
        _
      %p923 = scmp.le.s32.totalorder 2, %s17
      // Predicated region
      $region57: #{tpu_custom_call.1} parent=5 // pred_check
        %p924 = pneg %p923
      $region58: #{tpu_custom_call.1} parent=5 // pred_check_branch
        %926 = sbr.rel (%p924) target = $region60
      $region59: #{tpu_custom_call.1} parent=5 // pred_region
        %s927 = ssub.s32 %s17, 2
        // Predicated region
        $region61: #{tpu_custom_call.1} parent=59 // pred_check
          %p928 = pneg %p208
        $region62: #{tpu_custom_call.1} parent=59 // pred_check_branch
          %930 = sbr.rel (%p928) target = $region64
        $region63: #{tpu_custom_call.1} parent=59 // pred_region
          %s931 = sand.u32 %s193, 1
          %s932 = scalar_lea.sflag [#allocation5], %s931
          %s933 = sand.u32 %s193, 1
          %s934 = smul.addr %s933, 32
          %s935 = scalar_lea.vmem [#allocation6], %s934
          %936 = dma.done %s932, 512
        $region64: #{tpu_custom_call.1} parent=59 // pred_fallthru
          _
      $region60: #{tpu_custom_call.1} parent=5 // pred_fallthru
        _
    $region6: #{tpu_custom_call.1} parent=1 // loop_footer
      %s21 = sadd.s32 1, %s17
    $region7: #{tpu_custom_call.1} parent=1 // loop_footer_branch
      %16 = sbr.rel target = $region3
    $region8: #{tpu_custom_call.1} parent=1 // loop_exit
      _
    %937 = vsyncpa [#allocation4], 1
    %s938 = scalar_lea.sflag [#allocation4], 1
    %939 = vsyncpa %s938, 1
    %940 = vsyncpa [#allocation5], 1
    %s941 = scalar_lea.sflag [#allocation5], 1
    %942 = vsyncpa %s941, 1

</llo_original>
